<compile_context>
chip_gen: v7x
topology: tpu7x:2x2x1
jax: 0.10.0
libtpu: 0.0.40
codegen_flags: <defaults>
</compile_context>

<pallas_src>
import math

import jax
import jax.numpy as jnp
from jax.experimental import pallas as pl
from jax.experimental.pallas import tpu as pltpu


# ----------------------------- Pallas kernel ------------------------------ #
def ddpm_loss_kernel(scales_ref, x_ref, n_ref, cond_ref,
                     w1t_ref, w2t_ref, b2_ref, partial_ref):
    """One (batch b, pixel-tile p) grid point.

    x_ref / n_ref      : (1, C, TM) bf16  -- channels on sublanes, pixels on lanes
    scales_ref         : (2, B) f32 in SMEM -- [sqrt(ab_t), sqrt(1-ab_t)] per batch
    cond_ref           : (1, Hd, 1) f32   -- fused (time+label) bias + b1 for batch b
    w1t_ref            : (Hd, C) bf16,  w2t_ref: (C, Hd) bf16,  b2_ref: (C, 1) f32
    partial_ref        : (1, 1, 8, 128) f32 lane-dense tile holding this tile's
                         |est - noise| sum broadcast everywhere; reduced in JAX.
    """
    b = pl.program_id(0)

    x = x_ref[0].astype(jnp.float32)          # (C, TM)
    noise = n_ref[0].astype(jnp.float32)      # (C, TM)

    sab = scales_ref[0, b]                    # scalar f32 from SMEM
    s1mab = scales_ref[1, b]

    # forward diffusion q(x_t | x_0) (f32 VPU)
    noisy = sab * x + s1mab * noise           # (C, TM)

    # noise-prediction net: two 1x1 convs (channel matmuls) + ReLU.
    # bf16 MXU inputs, f32 accumulation; cond (= emb@we + be + b1) pre-folded.
    h = jnp.dot(w1t_ref[...], noisy.astype(jnp.bfloat16),
                preferred_element_type=jnp.float32) + cond_ref[0]   # (Hd, TM)
    h = jnp.maximum(h, 0.0)
    est = jnp.dot(w2t_ref[...], h.astype(jnp.bfloat16),
                  preferred_element_type=jnp.float32) + b2_ref[...]  # (C, TM)

    tile_sum = jnp.sum(jnp.abs(est - noise))                         # f32 partial L1
    partial_ref[...] = jnp.zeros_like(partial_ref) + tile_sum


# ------------------------------ plain-JAX glue ----------------------------- #
def make_variance_scheduler(beta_start=1e-4, beta_end=0.02, num_steps=1000):
    betas = jnp.linspace(beta_start, beta_end, num_steps, dtype=jnp.float32)
    alphas = 1.0 - betas
    alpha_bars = jnp.cumprod(alphas)
    return dict(betas=betas, alphas=alphas, alpha_bars=alpha_bars,
                num_steps=num_steps)


def sinusoidal_embedding(t, dim):
    half = dim // 2
    freqs = jnp.exp(-math.log(10000.0)
                    * jnp.arange(half, dtype=jnp.float32) / half)
    args = t.astype(jnp.float32)[:, None] * freqs[None, :]
    return jnp.concatenate([jnp.sin(args), jnp.cos(args)], axis=-1)


def init_params(key, C, Hd, De, num_classes):
    ks = jax.random.split(key, 4)

    def w(k, shape, fan_in):
        return jax.random.normal(k, shape, jnp.float32) / math.sqrt(fan_in)

    return dict(
        w1=w(ks[0], (C, Hd), C),
        b1=jnp.zeros((1, Hd), jnp.float32),
        we=w(ks[1], (De, Hd), De),
        be=jnp.zeros((1, Hd), jnp.float32),
        w2=w(ks[2], (Hd, C), Hd),
        b2=jnp.zeros((1, C), jnp.float32),
        label_emb=0.02 * jax.random.normal(ks[3], (num_classes, De),
                                           jnp.float32),
    )


def _pick_pixel_tile(hw):
    """Largest lane-dense pixel tile (multiple of 128) dividing HW, bounded."""
    for tm in (2048, 1024, 512, 256, 128):
        if hw % tm == 0:
            return tm
    if hw <= 8192:
        return hw          # full-extent block is legal; C*hw*2B per buffer is tiny
    # TODO(synk): pad+mask path for huge HW that is not a multiple of 128.
    raise NotImplementedError("HW must be a multiple of 128 or <= 8192")


def ddpm_forward(params, sched, x_nchw, label, key):
    B, C, H, W = x_nchw.shape
    HW = H * W
    De = params['we'].shape[0]
    Hd = params['w1'].shape[1]

    # t ~ Uniform{0..num_steps-1}, noise ~ N(0, I)  (torch.randint / randn_like)
    k_t, k_n = jax.random.split(key)
    t = jax.random.randint(k_t, (B,), 0, sched['num_steps'])
    # noise generated directly in the kernel layout: (B, C, HW) channels-major
    noise = jax.random.normal(k_n, (B, C, HW), dtype=jnp.float32)

    ab_t = sched['alpha_bars'][t]
    # (2, B) f32 delivered to SMEM: row 0 = sqrt(ab_t), row 1 = sqrt(1 - ab_t)
    scales = jnp.stack([jnp.sqrt(ab_t), jnp.sqrt(1.0 - ab_t)],
                       axis=0).astype(jnp.float32)

    # NCHW -> (B, C, HW) is a free contiguous reshape (no transpose pass)
    x_rows = x_nchw.reshape(B, C, HW)

    # hoisted conditioning: (time + label) emb -> Hd bias, folded with b1
    emb = sinusoidal_embedding(t, De) + params['label_emb'][label]   # (B, De)
    cond = (emb @ params['we'] + params['be'] + params['b1'])        # (B, Hd)
    cond = cond[:, :, None].astype(jnp.float32)                      # (B, Hd, 1)

    # transposed bf16 weights for the channels-on-sublanes layout
    w1t = params['w1'].T.astype(jnp.bfloat16)        # (Hd, C)
    w2t = params['w2'].T.astype(jnp.bfloat16)        # (C, Hd)
    b2 = params['b2'].reshape(C, 1).astype(jnp.float32)              # (C, 1)

    # bf16 activation streams (arithmetic stays f32 in-kernel)
    x_bf = x_rows.astype(jnp.bfloat16)
    n_bf = noise.astype(jnp.bfloat16)

    TM = _pick_pixel_tile(HW)
    P = HW // TM                      # pixel tiles per batch element

    flops = int(4 * B * HW * C * Hd + 10 * B * HW * C)
    bytes_accessed = int(x_bf.size * 2 + n_bf.size * 2 + cond.size * 4
                         + scales.size * 4 + w1t.size * 2 + w2t.size * 2
                         + b2.size * 4 + B * P * 8 * 128 * 4)
    ce = pl.CostEstimate(flops=flops, transcendentals=0,
                         bytes_accessed=bytes_accessed)

    grid_spec = pltpu.PrefetchScalarGridSpec(
        num_scalar_prefetch=0,
        grid=(B, P),
        in_specs=[
            pl.BlockSpec(memory_space=pltpu.MemorySpace.SMEM),        # scales (2,B)
            pl.BlockSpec((1, C, TM), lambda b, p: (b, 0, p)),         # x
            pl.BlockSpec((1, C, TM), lambda b, p: (b, 0, p)),         # noise
            pl.BlockSpec((1, Hd, 1), lambda b, p: (b, 0, 0)),         # fused bias
            pl.BlockSpec((Hd, C), lambda b, p: (0, 0)),               # w1^T (resident)
            pl.BlockSpec((C, Hd), lambda b, p: (0, 0)),               # w2^T (resident)
            pl.BlockSpec((C, 1), lambda b, p: (0, 0)),                # b2   (resident)
        ],
        out_specs=pl.BlockSpec((1, 1, 8, 128), lambda b, p: (b, p, 0, 0)),
    )

    partials = pl.pallas_call(
        ddpm_loss_kernel,
        grid_spec=grid_spec,
        out_shape=jax.ShapeDtypeStruct((B, P, 8, 128), jnp.float32),
        compiler_params=pltpu.CompilerParams(
            dimension_semantics=("parallel", "parallel")),   # >=B independent tiles
        cost_estimate=ce,
    )(scales, x_bf, n_bf, cond, w1t, w2t, b2)

    loss = jnp.sum(partials[:, :, 0, 0]) / float(B * C * H * W)   # reduction='mean'

    aux = dict(x_bf=x_bf, n_bf=n_bf, scales=scales, cond=cond,
               w1t=w1t, w2t=w2t, b2=b2)
    return loss, aux


def ddpm_forward_ref(x_bf, n_bf, scales, cond, w1t, w2t, b2):
    """Pure-JAX reference mirroring the kernel math (same bf16 dot inputs)."""
    x = x_bf.astype(jnp.float32)
    n = n_bf.astype(jnp.float32)
    sab = scales[0][:, None, None]
    s1mab = scales[1][:, None, None]
    noisy = sab * x + s1mab * n                                     # (B, C, HW)
    h = jnp.einsum('hc,bcp->bhp', w1t, noisy.astype(jnp.bfloat16),
                   preferred_element_type=jnp.float32) + cond       # (B, Hd, HW)
    h = jnp.maximum(h, 0.0)
    est = jnp.einsum('ch,bhp->bcp', w2t, h.astype(jnp.bfloat16),
                     preferred_element_type=jnp.float32) + b2[None]  # (B, C, HW)
    return jnp.mean(jnp.abs(est - n))


if __name__ == "__main__":
    B, C, H, W = 2, 4, 16, 16
    Hd, De, num_classes = 32, 32, 10

    key = jax.random.PRNGKey(0)
    k_param, k_x, k_label, k_fwd = jax.random.split(key, 4)

    sched = make_variance_scheduler(num_steps=1000)
    params = init_params(k_param, C, Hd, De, num_classes)

    x = jax.random.normal(k_x, (B, C, H, W), jnp.float32)
    label = jax.random.randint(k_label, (B,), 0, num_classes)

    loss, aux = ddpm_forward(params, sched, x, label, k_fwd)
    loss = jax.block_until_ready(loss)

    ref = ddpm_forward_ref(**aux)
    assert jnp.allclose(loss, ref, rtol=1e-3, atol=1e-4), (loss, ref)

    # TODO(synk): recover_sample / generate_sample (inference-time reverse
    # diffusion loop) are not part of forward() and are not implemented here.
    print("KERNEL_OK")
</pallas_src>

<mosaic_0001>
module attributes {stable_mosaic.version = 11 : i64} {
  func.func @ddpm_loss_kernel(%arg0: i32, %arg1: i32, %arg2: memref<2x2xf32, #tpu.memory_space<smem>>, %arg3: memref<1x4x256xbf16, #tpu.memory_space<vmem>>, %arg4: memref<1x4x256xbf16, #tpu.memory_space<vmem>>, %arg5: memref<1x32x1xf32, #tpu.memory_space<vmem>>, %arg6: memref<32x4xbf16, #tpu.memory_space<vmem>>, %arg7: memref<4x32xbf16, #tpu.memory_space<vmem>>, %arg8: memref<4x1xf32, #tpu.memory_space<vmem>>, %arg9: memref<1x1x8x128xf32, #tpu.memory_space<vmem>>) attributes {dimension_semantics = [#tpu.dimension_semantics<parallel>, #tpu.dimension_semantics<parallel>], iteration_bounds = array<i64: 2, 1>, scalar_prefetch = 0 : i64, scratch_operands = 0 : i64, tpu.core_type = #tpu.core_type<tc>, window_params = [{transform_indices = @transform_0, window_bounds = array<i64: 2, 2>}, {transform_indices = @transform_1, window_bounds = array<i64: 1, 4, 256>}, {transform_indices = @transform_2, window_bounds = array<i64: 1, 4, 256>}, {transform_indices = @transform_3, window_bounds = array<i64: 1, 32, 1>}, {pipeline_mode = #tpu.pipeline_mode<synchronous>, transform_indices = @transform_4, window_bounds = array<i64: 32, 4>}, {pipeline_mode = #tpu.pipeline_mode<synchronous>, transform_indices = @transform_5, window_bounds = array<i64: 4, 32>}, {pipeline_mode = #tpu.pipeline_mode<synchronous>, transform_indices = @transform_6, window_bounds = array<i64: 4, 1>}, {transform_indices = @transform_7, window_bounds = array<i64: 1, 1, 8, 128>}]} {
    %c0 = arith.constant 0 : index
    %c0_0 = arith.constant 0 : index
    %c0_1 = arith.constant 0 : index
    %0 = vector.load %arg3[%c0, %c0_0, %c0_1] : memref<1x4x256xbf16, #tpu.memory_space<vmem>>, vector<1x4x256xbf16>
    %1 = vector.shape_cast %0 : vector<1x4x256xbf16> to vector<4x256xbf16>
    %2 = arith.extf %1 : vector<4x256xbf16> to vector<4x256xf32>
    %c0_2 = arith.constant 0 : index
    %c0_3 = arith.constant 0 : index
    %c0_4 = arith.constant 0 : index
    %3 = vector.load %arg4[%c0_2, %c0_3, %c0_4] : memref<1x4x256xbf16, #tpu.memory_space<vmem>>, vector<1x4x256xbf16>
    %4 = vector.shape_cast %3 : vector<1x4x256xbf16> to vector<4x256xbf16>
    %5 = arith.extf %4 : vector<4x256xbf16> to vector<4x256xf32>
    %c0_5 = arith.constant 0 : index
    %6 = arith.index_cast %arg0 : i32 to index
    %7 = memref.load %arg2[%c0_5, %6] : memref<2x2xf32, #tpu.memory_space<smem>>
    %c1 = arith.constant 1 : index
    %8 = arith.index_cast %arg0 : i32 to index
    %9 = memref.load %arg2[%c1, %8] : memref<2x2xf32, #tpu.memory_space<smem>>
    %10 = vector.broadcast %7 : f32 to vector<4x256xf32>
    %11 = arith.mulf %10, %2 : vector<4x256xf32>
    %12 = vector.broadcast %9 : f32 to vector<4x256xf32>
    %13 = arith.mulf %12, %5 : vector<4x256xf32>
    %14 = arith.addf %11, %13 : vector<4x256xf32>
    %c0_6 = arith.constant 0 : index
    %c0_7 = arith.constant 0 : index
    %15 = vector.load %arg6[%c0_6, %c0_7] : memref<32x4xbf16, #tpu.memory_space<vmem>>, vector<32x4xbf16>
    %16 = arith.truncf %14 : vector<4x256xf32> to vector<4x256xbf16>
    %cst = arith.constant dense<0.000000e+00> : vector<32x256xf32>
    %17 = tpu.matmul %15, %16, %cst {dimension_numbers = #tpu.dot_dimension_numbers<[1], [0], [0], [1], [0, 0, 1, 1], [], []>} : vector<32x4xbf16>, vector<4x256xbf16>, vector<32x256xf32> -> vector<32x256xf32>
    %c0_8 = arith.constant 0 : index
    %c0_9 = arith.constant 0 : index
    %c0_10 = arith.constant 0 : index
    %18 = vector.load %arg5[%c0_8, %c0_9, %c0_10] : memref<1x32x1xf32, #tpu.memory_space<vmem>>, vector<1x32x1xf32>
    %19 = vector.shape_cast %18 : vector<1x32x1xf32> to vector<32x1xf32>
    %20 = vector.broadcast %19 : vector<32x1xf32> to vector<32x256xf32>
    %21 = arith.addf %17, %20 : vector<32x256xf32>
    %cst_11 = arith.constant 0.000000e+00 : f32
    %22 = vector.broadcast %cst_11 : f32 to vector<32x256xf32>
    %23 = arith.maximumf %21, %22 : vector<32x256xf32>
    %c0_12 = arith.constant 0 : index
    %c0_13 = arith.constant 0 : index
    %24 = vector.load %arg7[%c0_12, %c0_13] : memref<4x32xbf16, #tpu.memory_space<vmem>>, vector<4x32xbf16>
    %25 = arith.truncf %23 : vector<32x256xf32> to vector<32x256xbf16>
    %cst_14 = arith.constant dense<0.000000e+00> : vector<4x256xf32>
    %26 = tpu.matmul %24, %25, %cst_14 {dimension_numbers = #tpu.dot_dimension_numbers<[1], [0], [0], [1], [0, 0, 1, 1], [], []>} : vector<4x32xbf16>, vector<32x256xbf16>, vector<4x256xf32> -> vector<4x256xf32>
    %c0_15 = arith.constant 0 : index
    %c0_16 = arith.constant 0 : index
    %27 = vector.load %arg8[%c0_15, %c0_16] : memref<4x1xf32, #tpu.memory_space<vmem>>, vector<4x1xf32>
    %28 = vector.broadcast %27 : vector<4x1xf32> to vector<4x256xf32>
    %29 = arith.addf %26, %28 : vector<4x256xf32>
    %30 = arith.subf %29, %5 : vector<4x256xf32>
    %31 = math.absf %30 : vector<4x256xf32>
    %32 = vector.shape_cast %31 : vector<4x256xf32> to vector<1x4x256xf32>
    %cst_17 = arith.constant dense<0.000000e+00> : vector<1xf32>
    %33 = vector.multi_reduction <add>, %32, %cst_17 [1, 2] : vector<1x4x256xf32> to vector<1xf32>
    %34 = vector.shape_cast %33 : vector<1xf32> to vector<1x1x1xf32>
    %35 = vector.extract %34[0, 0, 0] : f32 from vector<1x1x1xf32>
    %cst_18 = arith.constant 0.000000e+00 : f32
    %36 = vector.broadcast %cst_18 : f32 to vector<1x1x8x128xf32>
    %37 = vector.broadcast %35 : f32 to vector<1x1x8x128xf32>
    %38 = arith.addf %36, %37 : vector<1x1x8x128xf32>
    %c0_19 = arith.constant 0 : index
    %c0_20 = arith.constant 0 : index
    %c0_21 = arith.constant 0 : index
    %c0_22 = arith.constant 0 : index
    %39 = vector.load %arg9[%c0_19, %c0_20, %c0_21, %c0_22] : memref<1x1x8x128xf32, #tpu.memory_space<vmem>>, vector<1x1x8x128xf32>
    tpu.vector_store %arg9[%c0_19, %c0_20, %c0_21, %c0_22], %38 {strides = array<i32>} : memref<1x1x8x128xf32, #tpu.memory_space<vmem>>, vector<1x1x8x128xf32>,
    return
  }
  func.func @transform_0(%arg0: i32, %arg1: i32) -> (i32, i32) {
    %c0_i32 = arith.constant 0 : i32
    %c0_i32_0 = arith.constant 0 : i32
    %c0_i32_1 = arith.constant 0 : i32
    return %c0_i32, %c0_i32_0 : i32, i32
  }
  func.func @transform_1(%arg0: i32, %arg1: i32) -> (i32, i32, i32) {
    %c0_i32 = arith.constant 0 : i32
    %c0_i32_0 = arith.constant 0 : i32
    return %arg0, %c0_i32, %arg1 : i32, i32, i32
  }
  func.func @transform_2(%arg0: i32, %arg1: i32) -> (i32, i32, i32) {
    %c0_i32 = arith.constant 0 : i32
    %c0_i32_0 = arith.constant 0 : i32
    return %arg0, %c0_i32, %arg1 : i32, i32, i32
  }
  func.func @transform_3(%arg0: i32, %arg1: i32) -> (i32, i32, i32) {
    %c0_i32 = arith.constant 0 : i32
    %c0_i32_0 = arith.constant 0 : i32
    %c0_i32_1 = arith.constant 0 : i32
    return %arg0, %c0_i32, %c0_i32_0 : i32, i32, i32
  }
  func.func @transform_4(%arg0: i32, %arg1: i32) -> (i32, i32) {
    %c0_i32 = arith.constant 0 : i32
    %c0_i32_0 = arith.constant 0 : i32
    %c0_i32_1 = arith.constant 0 : i32
    return %c0_i32, %c0_i32_0 : i32, i32
  }
  func.func @transform_5(%arg0: i32, %arg1: i32) -> (i32, i32) {
    %c0_i32 = arith.constant 0 : i32
    %c0_i32_0 = arith.constant 0 : i32
    %c0_i32_1 = arith.constant 0 : i32
    return %c0_i32, %c0_i32_0 : i32, i32
  }
  func.func @transform_6(%arg0: i32, %arg1: i32) -> (i32, i32) {
    %c0_i32 = arith.constant 0 : i32
    %c0_i32_0 = arith.constant 0 : i32
    %c0_i32_1 = arith.constant 0 : i32
    return %c0_i32, %c0_i32_0 : i32, i32
  }
  func.func @transform_7(%arg0: i32, %arg1: i32) -> (i32, i32, i32, i32) {
    %c0_i32 = arith.constant 0 : i32
    %c0_i32_0 = arith.constant 0 : i32
    %c0_i32_1 = arith.constant 0 : i32
    return %arg0, %arg1, %c0_i32, %c0_i32_0 : i32, i32, i32, i32
  }
}

</mosaic_0001>

<llo_original>
// kernel: tpu_custom_call.1
$region0: #{tpu_custom_call.1}
  #allocation0 [shape = 'u32[]', space=smem, size = 0x4, offset = 0x4, fixed_abs, tag = 'smem constant byte address 0x4 - core index']
  #allocation1 [shape = 'u32[144,128]{1,0:T(1,128)}', space=vmem, size = 0x12000, scoped, tag = 'internal scratch']
  %s0 = inlined_call_operand.vmem [shape: f32[2,2], index: 0, kind: input, shape index: {}]
  %s1 = inlined_call_operand.vmem [shape: bf16[2,4,256], index: 1, kind: input, shape index: {}]
  %s2 = inlined_call_operand.vmem [shape: bf16[2,4,256], index: 2, kind: input, shape index: {}]
  %s3 = inlined_call_operand.vmem [shape: f32[2,32,1], index: 3, kind: input, shape index: {}]
  %s4 = inlined_call_operand.vmem [shape: bf16[32,4], index: 4, kind: input, shape index: {}]
  %s5 = inlined_call_operand.vmem [shape: bf16[4,32], index: 5, kind: input, shape index: {}]
  %s6 = inlined_call_operand.vmem [shape: f32[4,1], index: 6, kind: input, shape index: {}]
  %s7 = inlined_call_operand.hbm [shape: f32[2,1,8,128], index: 7, kind: output, shape index: {}]
  %s8 = sld [smem:[#allocation0]]
  $region65: #{tpu_custom_call.1} parent=0
    _
  %s10 = ssub.s32 1, %s8
  %s11 = scalar_select 0, %s10, %s8
  $region1: #{tpu_custom_call.1} parent=0
    #allocation2 [shape = 'u8[1024]{0}', space=smem, size = 0x400, scoped, tag = 'input window, operand 0, single buffered']
    #allocation3 [shape = 's32[2]{0}', space=sflag, size = 0x8, scoped, tag = 'scoped memory for tpu_custom_call.1']
    #allocation4 [shape = 's32[2]{0}', space=sflag, size = 0x8, scoped, tag = 'scoped memory for tpu_custom_call.1']
    #allocation5 [shape = 'u8[8192]{0}', space=vmem, size = 0x2000, scoped, tag = 'output window, operand 0']
    %12 = vsyncpa [#allocation4], 0
    %13 = vsyncpa [#allocation3], 0
    %s14 = scalar_lea.sflag [#allocation3], 1
    %15 = vsyncpa %s14, 0
    loop: start=0, step=1, limit=4
    $region2: #{tpu_custom_call.1} parent=1 // loop_pre_header
      _
    $region3: #{tpu_custom_call.1} parent=1 // loop_header
      %s17 = sphi 0, %s21
      %p18 = scmp.ge.s32.totalorder %s17, 4
      %s24 = sphi 0, %s36
      %s25 = sphi 0, %s32
      %s26 = sphi 0, %s24
      %s27 = sphi 0, %s25
      %s28 = sphi 0, %s26
      %s29 = sphi 0, %s27
      %s37 = sphi 0, %s37
      %s39 = sphi 0, %s37
      %s40 = sphi 0, %s39
      %s54 = sphi 0, %s40
      %s62 = sphi 0, %s64
      %s65 = sphi 0, %s62
      %s66 = sphi 0, %s65
      %s82 = sphi 0, %s66
      %s90 = sphi 0, %s92
      %s93 = sphi 0, %s90
      %s94 = sphi 0, %s93
      %s110 = sphi 0, %s94
      %s116 = sphi 0, %s118
      %s119 = sphi 0, %s116
      %s120 = sphi 0, %s119
      %s136 = sphi 0, %s120
      %s140 = sphi 0, %s140
      %s142 = sphi 0, %s140
      %s143 = sphi 0, %s142
      %s157 = sphi 0, %s143
      %s161 = sphi 0, %s161
      %s163 = sphi 0, %s161
      %s164 = sphi 0, %s163
      %s178 = sphi 0, %s164
      %s182 = sphi 0, %s182
      %s184 = sphi 0, %s182
      %s185 = sphi 0, %s184
      %s199 = sphi 0, %s185
      %s207 = sphi 0, %s209
      %s210 = sphi 0, %s207
      %s211 = sphi 0, %s210
      %s227 = sphi 0, %s211
    $region4: #{tpu_custom_call.1} parent=1 // loop_header_branch
      %20 = sbr.rel (%p18) target = $region8
    $region5: #{tpu_custom_call.1} parent=1 // loop_body
      %s22 = ssub.s32 %s17, 1
      %s23 = ssub.s32 %s17, 2
      %s30 = sadd.s32 1, %s25
      %p31 = scmp.ge.s32.totalorder %s30, 1
      %s32 = scalar_select %p31, 0, %s30
      %s33 = sadd.s32 1, %s24
      %s34 = scalar_select %p31, %s33, %s24
      %p35 = scmp.ge.s32.totalorder %s34, 2
      %s36 = scalar_select %p35, 0, %s34
      %s38 = sadd.s32 %s37, 1
      %p41 = scmp.eq.s32.totalorder %s17, 1
      %p42 = scmp.ne.s32.totalorder %s37, %s39
      %p43 = scmp.eq.s32.totalorder %s17, 0
      %p44 = por %p42, %p43
      %p45 = scmp.ne.s32.totalorder %s37, %s39
      %p46 = scmp.eq.s32.totalorder %s22, 1
      %p47 = por %p45, %p46
      %p48 = scmp.ne.s32.totalorder %s39, %s40
      %p49 = scmp.eq.s32.totalorder %s22, 0
      %p50 = por %p48, %p49
      %p51 = scmp.ne.s32.totalorder %s39, %s40
      %p52 = scmp.eq.s32.totalorder %s23, 1
      %p53 = por %p51, %p52
      %p55 = scmp.ne.s32.totalorder %s40, %s54
      %p56 = scmp.eq.s32.totalorder %s23, 0
      %p57 = por %p55, %p56
      %s58 = ssub.s32 %s24, %s36
      %s59 = ssub.s32 %s25, %s32
      %s60 = sor.u32 %s58, %s59
      %p61 = scmp.eq.s32.totalorder %s60, 0
      %s63 = sadd.s32 %s62, 1
      %s64 = scalar_select %p61, %s62, %s63
      %p67 = pneg %p61
      %p68 = scmp.eq.s32.totalorder %s17, 1
      %p69 = por %p67, %p68
      %p70 = scmp.ne.s32.totalorder %s62, %s65
      %p71 = scmp.eq.s32.totalorder %s17, 0
      %p72 = por %p70, %p71
      %p73 = scmp.ne.s32.totalorder %s62, %s65
      %p74 = scmp.eq.s32.totalorder %s22, 1
      %p75 = por %p73, %p74
      %p76 = scmp.ne.s32.totalorder %s65, %s66
      %p77 = scmp.eq.s32.totalorder %s22, 0
      %p78 = por %p76, %p77
      %p79 = scmp.ne.s32.totalorder %s65, %s66
      %p80 = scmp.eq.s32.totalorder %s23, 1
      %p81 = por %p79, %p80
      %p83 = scmp.ne.s32.totalorder %s66, %s82
      %p84 = scmp.eq.s32.totalorder %s23, 0
      %p85 = por %p83, %p84
      %s86 = ssub.s32 %s24, %s36
      %s87 = ssub.s32 %s25, %s32
      %s88 = sor.u32 %s86, %s87
      %p89 = scmp.eq.s32.totalorder %s88, 0
      %s91 = sadd.s32 %s90, 1
      %s92 = scalar_select %p89, %s90, %s91
      %p95 = pneg %p89
      %p96 = scmp.eq.s32.totalorder %s17, 1
      %p97 = por %p95, %p96
      %p98 = scmp.ne.s32.totalorder %s90, %s93
      %p99 = scmp.eq.s32.totalorder %s17, 0
      %p100 = por %p98, %p99
      %p101 = scmp.ne.s32.totalorder %s90, %s93
      %p102 = scmp.eq.s32.totalorder %s22, 1
      %p103 = por %p101, %p102
      %p104 = scmp.ne.s32.totalorder %s93, %s94
      %p105 = scmp.eq.s32.totalorder %s22, 0
      %p106 = por %p104, %p105
      %p107 = scmp.ne.s32.totalorder %s93, %s94
      %p108 = scmp.eq.s32.totalorder %s23, 1
      %p109 = por %p107, %p108
      %p111 = scmp.ne.s32.totalorder %s94, %s110
      %p112 = scmp.eq.s32.totalorder %s23, 0
      %p113 = por %p111, %p112
      %s114 = ssub.s32 %s24, %s36
      %p115 = scmp.eq.s32.totalorder %s114, 0
      %s117 = sadd.s32 %s116, 1
      %s118 = scalar_select %p115, %s116, %s117
      %p121 = pneg %p115
      %p122 = scmp.eq.s32.totalorder %s17, 1
      %p123 = por %p121, %p122
      %p124 = scmp.ne.s32.totalorder %s116, %s119
      %p125 = scmp.eq.s32.totalorder %s17, 0
      %p126 = por %p124, %p125
      %p127 = scmp.ne.s32.totalorder %s116, %s119
      %p128 = scmp.eq.s32.totalorder %s22, 1
      %p129 = por %p127, %p128
      %p130 = scmp.ne.s32.totalorder %s119, %s120
      %p131 = scmp.eq.s32.totalorder %s22, 0
      %p132 = por %p130, %p131
      %p133 = scmp.ne.s32.totalorder %s119, %s120
      %p134 = scmp.eq.s32.totalorder %s23, 1
      %p135 = por %p133, %p134
      %p137 = scmp.ne.s32.totalorder %s120, %s136
      %p138 = scmp.eq.s32.totalorder %s23, 0
      %p139 = por %p137, %p138
      %s141 = sadd.s32 %s140, 1
      %p144 = scmp.eq.s32.totalorder %s17, 1
      %p145 = scmp.ne.s32.totalorder %s140, %s142
      %p146 = scmp.eq.s32.totalorder %s17, 0
      %p147 = por %p145, %p146
      %p148 = scmp.ne.s32.totalorder %s140, %s142
      %p149 = scmp.eq.s32.totalorder %s22, 1
      %p150 = por %p148, %p149
      %p151 = scmp.ne.s32.totalorder %s142, %s143
      %p152 = scmp.eq.s32.totalorder %s22, 0
      %p153 = por %p151, %p152
      %p154 = scmp.ne.s32.totalorder %s142, %s143
      %p155 = scmp.eq.s32.totalorder %s23, 1
      %p156 = por %p154, %p155
      %p158 = scmp.ne.s32.totalorder %s143, %s157
      %p159 = scmp.eq.s32.totalorder %s23, 0
      %p160 = por %p158, %p159
      %s162 = sadd.s32 %s161, 1
      %p165 = scmp.eq.s32.totalorder %s17, 1
      %p166 = scmp.ne.s32.totalorder %s161, %s163
      %p167 = scmp.eq.s32.totalorder %s17, 0
      %p168 = por %p166, %p167
      %p169 = scmp.ne.s32.totalorder %s161, %s163
      %p170 = scmp.eq.s32.totalorder %s22, 1
      %p171 = por %p169, %p170
      %p172 = scmp.ne.s32.totalorder %s163, %s164
      %p173 = scmp.eq.s32.totalorder %s22, 0
      %p174 = por %p172, %p173
      %p175 = scmp.ne.s32.totalorder %s163, %s164
      %p176 = scmp.eq.s32.totalorder %s23, 1
      %p177 = por %p175, %p176
      %p179 = scmp.ne.s32.totalorder %s164, %s178
      %p180 = scmp.eq.s32.totalorder %s23, 0
      %p181 = por %p179, %p180
      %s183 = sadd.s32 %s182, 1
      %p186 = scmp.eq.s32.totalorder %s17, 1
      %p187 = scmp.ne.s32.totalorder %s182, %s184
      %p188 = scmp.eq.s32.totalorder %s17, 0
      %p189 = por %p187, %p188
      %p190 = scmp.ne.s32.totalorder %s182, %s184
      %p191 = scmp.eq.s32.totalorder %s22, 1
      %p192 = por %p190, %p191
      %p193 = scmp.ne.s32.totalorder %s184, %s185
      %p194 = scmp.eq.s32.totalorder %s22, 0
      %p195 = por %p193, %p194
      %p196 = scmp.ne.s32.totalorder %s184, %s185
      %p197 = scmp.eq.s32.totalorder %s23, 1
      %p198 = por %p196, %p197
      %p200 = scmp.ne.s32.totalorder %s185, %s199
      %p201 = scmp.eq.s32.totalorder %s23, 0
      %p202 = por %p200, %p201
      %s203 = ssub.s32 %s24, %s36
      %s204 = ssub.s32 %s25, %s32
      %s205 = sor.u32 %s203, %s204
      %p206 = scmp.eq.s32.totalorder %s205, 0
      %s208 = sadd.s32 %s207, 1
      %s209 = scalar_select %p206, %s207, %s208
      %p212 = pneg %p206
      %p213 = scmp.eq.s32.totalorder %s17, 1
      %p214 = por %p212, %p213
      %p215 = scmp.ne.s32.totalorder %s207, %s210
      %p216 = scmp.eq.s32.totalorder %s17, 0
      %p217 = por %p215, %p216
      %p218 = scmp.ne.s32.totalorder %s207, %s210
      %p219 = scmp.eq.s32.totalorder %s22, 1
      %p220 = por %p218, %p219
      %p221 = scmp.ne.s32.totalorder %s210, %s211
      %p222 = scmp.eq.s32.totalorder %s22, 0
      %p223 = por %p221, %p222
      %p224 = scmp.ne.s32.totalorder %s210, %s211
      %p225 = scmp.eq.s32.totalorder %s23, 1
      %p226 = por %p224, %p225
      %p228 = scmp.ne.s32.totalorder %s211, %s227
      %p229 = scmp.eq.s32.totalorder %s23, 0
      %p230 = por %p228, %p229
      %p231 = scmp.le.s32.totalorder 1, %s17
      %p232 = scmp.lt.s32.totalorder %s17, 3
      %p233 = pnand %p231, %p232
      %p234 = pneg %p233
      // Predicated region
      $region9: #{tpu_custom_call.1} parent=5 // pred_check
        _
      $region10: #{tpu_custom_call.1} parent=5 // pred_check_branch
        %236 = sbr.rel (%p233) target = $region12
      $region11: #{tpu_custom_call.1} parent=5 // pred_region
        %s237 = ssub.s32 %s17, 1
        // Predicated region
        $region13: #{tpu_custom_call.1} parent=11 // pred_check
          %p238 = pneg %p50
        $region14: #{tpu_custom_call.1} parent=11 // pred_check_branch
          %240 = sbr.rel (%p238) target = $region16
        $region15: #{tpu_custom_call.1} parent=11 // pred_region
          %s242 = ssub.s32 32, 32
          %243 = vsyncadd [#allocation4], %s242
          %s245 = sshll.u32 %s0, 4
          %s246 = int_to_ptr.vmem [resolvable:$true] %s245
          %248 = dma.vmem_to_smem %s246, 32, [#allocation2], [#allocation4]
        $region16: #{tpu_custom_call.1} parent=11 // pred_fallthru
          _
        // Predicated region
        $region17: #{tpu_custom_call.1} parent=11 // pred_check
          %p249 = pneg %p153
        $region18: #{tpu_custom_call.1} parent=11 // pred_check_branch
          %251 = sbr.rel (%p249) target = $region20
        $region19: #{tpu_custom_call.1} parent=11 // pred_region
          _
        $region20: #{tpu_custom_call.1} parent=11 // pred_fallthru
          _
        // Predicated region
        $region21: #{tpu_custom_call.1} parent=11 // pred_check
          %p252 = pneg %p174
        $region22: #{tpu_custom_call.1} parent=11 // pred_check_branch
          %254 = sbr.rel (%p252) target = $region24
        $region23: #{tpu_custom_call.1} parent=11 // pred_region
          _
        $region24: #{tpu_custom_call.1} parent=11 // pred_fallthru
          _
        // Predicated region
        $region25: #{tpu_custom_call.1} parent=11 // pred_check
          %p255 = pneg %p195
        $region26: #{tpu_custom_call.1} parent=11 // pred_check_branch
          %257 = sbr.rel (%p255) target = $region28
        $region27: #{tpu_custom_call.1} parent=11 // pred_region
          _
        $region28: #{tpu_custom_call.1} parent=11 // pred_fallthru
          _
      $region12: #{tpu_custom_call.1} parent=5 // pred_fallthru
        _
      %p258 = scmp.lt.s32.totalorder %s17, 2
      // Predicated region
      $region29: #{tpu_custom_call.1} parent=5 // pred_check
        %p259 = pneg %p258
      $region30: #{tpu_custom_call.1} parent=5 // pred_check_branch
        %261 = sbr.rel (%p259) target = $region32
      $region31: #{tpu_custom_call.1} parent=5 // pred_region
        // Predicated region
        $region33: #{tpu_custom_call.1} parent=31 // pred_check
          %p262 = pneg %p72
        $region34: #{tpu_custom_call.1} parent=31 // pred_check_branch
          %264 = sbr.rel (%p262) target = $region36
        $region35: #{tpu_custom_call.1} parent=31 // pred_region
          %s265 = smul.u32 2, %s25
          %p266 = scmp.lt.s32.totalorder %s24, 1
          %s267 = scalar_select %p266, %s24, 1
          %p268 = scmp.lt.s32.totalorder %s265, 1
          %s269 = scalar_select %p268, %s265, 1
          %s270 = smul.addr %s267, 2
          %s271 = sadd.s32 %s269, %s270
          %s272 = smul.addr %s271, 2
          %s273 = scalar_lea.vmem %s1, %s272
          %s274 = smul.u32 2, %s25
        $region36: #{tpu_custom_call.1} parent=31 // pred_fallthru
          _
        // Predicated region
        $region37: #{tpu_custom_call.1} parent=31 // pred_check
          %p275 = pneg %p100
        $region38: #{tpu_custom_call.1} parent=31 // pred_check_branch
          %277 = sbr.rel (%p275) target = $region40
        $region39: #{tpu_custom_call.1} parent=31 // pred_region
          %s278 = smul.u32 2, %s25
          %p279 = scmp.lt.s32.totalorder %s24, 1
          %s280 = scalar_select %p279, %s24, 1
          %p281 = scmp.lt.s32.totalorder %s278, 1
          %s282 = scalar_select %p281, %s278, 1
          %s283 = smul.addr %s280, 2
          %s284 = sadd.s32 %s282, %s283
          %s285 = smul.addr %s284, 2
          %s286 = scalar_lea.vmem %s2, %s285
          %s287 = smul.u32 2, %s25
        $region40: #{tpu_custom_call.1} parent=31 // pred_fallthru
          _
        // Predicated region
        $region41: #{tpu_custom_call.1} parent=31 // pred_check
          %p288 = pneg %p126
        $region42: #{tpu_custom_call.1} parent=31 // pred_check_branch
          %290 = sbr.rel (%p288) target = $region44
        $region43: #{tpu_custom_call.1} parent=31 // pred_region
          %p291 = scmp.lt.s32.totalorder %s24, 1
          %s292 = scalar_select %p291, %s24, 1
          %s293 = smul.addr %s292, 4
          %s294 = smul.addr %s293, 8
          %s295 = scalar_lea.vmem %s3, %s294
        $region44: #{tpu_custom_call.1} parent=31 // pred_fallthru
          _
      $region32: #{tpu_custom_call.1} parent=5 // pred_fallthru
        _
      %p296 = scmp.le.s32.totalorder 1, %s17
      %p297 = scmp.lt.s32.totalorder %s17, 3
      %p298 = pnand %p296, %p297
      %p299 = pneg %p298
      // Predicated region
      $region45: #{tpu_custom_call.1} parent=5 // pred_check
        _
      $region46: #{tpu_custom_call.1} parent=5 // pred_check_branch
        %301 = sbr.rel (%p298) target = $region48
      $region47: #{tpu_custom_call.1} parent=5 // pred_region
        %s302 = ssub.s32 %s17, 1
        // Predicated region
        $region49: #{tpu_custom_call.1} parent=47 // pred_check
          %p303 = pneg %p50
        $region50: #{tpu_custom_call.1} parent=47 // pred_check_branch
          %305 = sbr.rel (%p303) target = $region52
        $region51: #{tpu_custom_call.1} parent=47 // pred_region
          %306 = dma.done [#allocation4], 32
        $region52: #{tpu_custom_call.1} parent=47 // pred_fallthru
          _
        %307 = sfence
        %p308 = pneg %p50
        %p309 = pneg %p47
        %s310 = smul.u32 2, %s27
        %p311 = scmp.lt.s32.totalorder %s26, 1
        %s312 = scalar_select %p311, %s26, 1
        %p313 = scmp.lt.s32.totalorder %s310, 1
        %s314 = scalar_select %p313, %s310, 1
        %s315 = smul.addr %s312, 2
        %s316 = sadd.s32 %s314, %s315
        %s317 = smul.addr %s316, 2
        %s318 = scalar_lea.vmem %s1, %s317
        %p319 = pneg %p78
        %p320 = pneg %p75
        %s321 = smul.u32 2, %s27
        %p322 = scmp.lt.s32.totalorder %s26, 1
        %s323 = scalar_select %p322, %s26, 1
        %p324 = scmp.lt.s32.totalorder %s321, 1
        %s325 = scalar_select %p324, %s321, 1
        %s326 = smul.addr %s323, 2
        %s327 = sadd.s32 %s325, %s326
        %s328 = smul.addr %s327, 2
        %s329 = scalar_lea.vmem %s2, %s328
        %p330 = pneg %p106
        %p331 = pneg %p103
        %p332 = scmp.lt.s32.totalorder %s26, 1
        %s333 = scalar_select %p332, %s26, 1
        %s334 = smul.addr %s333, 4
        %s335 = smul.addr %s334, 8
        %s336 = scalar_lea.vmem %s3, %s335
        %p337 = pneg %p132
        %p338 = pneg %p129
        %p339 = pneg %p153
        %p340 = pneg %p150
        %p341 = pneg %p174
        %p342 = pneg %p171
        %p343 = pneg %p195
        %p344 = pneg %p192
        %p345 = pneg %p223
        %p346 = pneg %p220
        %s347 = sand.u32 %s210, 1
        %s348 = scalar_lea.sflag [#allocation3], %s347
        %s349 = sand.u32 %s210, 1
        %s350 = smul.addr %s349, 8
        %s351 = scalar_lea.vmem [#allocation5], %s350
        %s352 = smul.u32 2, %s27
        %p353 = scmp.lt.s32.totalorder %s26, 1
        %s354 = scalar_select %p353, %s26, 1
        %p355 = scmp.lt.s32.totalorder %s352, 1
        %s356 = scalar_select %p355, %s352, 1
        %s357 = smul.addr %s354, 2
        %s358 = sadd.s32 %s356, %s357
        %s359 = smul.addr %s358, 2
        %s360 = scalar_lea.vmem %s1, %s359
        %s361 = smul.u32 2, %s27
        %s362 = smul.u32 2, %s27
        %p363 = scmp.lt.s32.totalorder %s26, 1
        %s364 = scalar_select %p363, %s26, 1
        %p365 = scmp.lt.s32.totalorder %s362, 1
        %s366 = scalar_select %p365, %s362, 1
        %s367 = smul.addr %s364, 2
        %s368 = sadd.s32 %s366, %s367
        %s369 = smul.addr %s368, 2
        %s370 = scalar_lea.vmem %s2, %s369
        %s371 = smul.u32 2, %s27
        %p372 = scmp.lt.s32.totalorder %s26, 1
        %s373 = scalar_select %p372, %s26, 1
        %s374 = smul.addr %s373, 4
        %s375 = smul.addr %s374, 8
        %s376 = scalar_lea.vmem %s3, %s375
        %v378 = vld [vmem:[%s360] sm:$0xf]
        %v379 = vunpack.c.l.bf16 %v378
        %v380 = vld [vmem:[%s370] sm:$0xf]
        %v381 = vunpack.c.l.bf16 %v380
        %s382 = sld [smem:[#allocation2 + %s26]]
        %s383 = sshra.s32 %s26, 7
        %s384 = sand.u32 %s26, 127
        %s385 = sadd.s32 %s383, 1
        %s386 = smul.u32 %s385, 128
        %s387 = sshra.s32 %s26, 7
        %s388 = sand.u32 %s26, 127
        %s389 = sadd.s32 %s386, %s388
        %s390 = sld [smem:[#allocation2 + %s389]]
        %v391 = vstv %s382
        %v392 = vmul.f32 %v391, %v379
        %v393 = vstv %s390
        %v394 = vmul.f32 %v393, %v381
        %v395 = vadd.f32 %v392, %v394
        %v396 = vld [vmem:[%s4] sm:$0xf]
        %v397 = vld [vmem:[%s4 + $0x4] sm:$0xf]
        %v398 = vld [vmem:[%s4 + $0x8] sm:$0xf]
        %v399 = vld [vmem:[%s4 + $0xc] sm:$0xf]
        %v401 = vcombine.high %v395, %v395
        %v403 = vpack.c.bf16 %v395, %v395
        %v404 = vpack.c.bf16 %v401, %v401
        %v405 = vld [vmem:[%s376] sm:$0xff]
        %v406 = vld [vmem:[%s376 + $0x8] sm:$0xff]
        %v407 = vld [vmem:[%s376 + $0x10] sm:$0xff]
        %v408 = vld [vmem:[%s376 + $0x18] sm:$0xff]
        %410 = vset.pattern.permute.xlu0 0
        %411 = vperm.xlu0 %410, %v405
        %v412 = vpop.permute.xlu0 %411
        %415 = vset.pattern.permute.xlu0 0
        %416 = vperm.xlu0 %415, %v406
        %v417 = vpop.permute.xlu0 %416
        %420 = vset.pattern.permute.xlu0 0
        %421 = vperm.xlu0 %420, %v407
        %v422 = vpop.permute.xlu0 %421
        %425 = vset.pattern.permute.xlu0 0
        %426 = vperm.xlu0 %425, %v408
        %v427 = vpop.permute.xlu0 %426
        %v433 = vunpack.c.l.b16 %v396
        %v434 = vunpack.c.l.b16 %v397
        %v435 = vunpack.c.l.b16 %v398
        %v436 = vunpack.c.l.b16 %v399
        %v437 = vpack.c.b16 %v434, %v433
        %v438 = vpack.c.b16 %v436, %v435
        %vm439 = vcmask 31744
        %v441 = vsel %vm439, %v437, 0
        %v444 = vsel %vm439, %v438, 0
        %vm446 = vcmask 1041408
        %v448 = vsel %vm446, %v403, 0
        %v451 = vsel %vm446, %v404, 0
        %453 = vmatprep.subr.bf16.mxu0 %v451
        %454 = vmatpush1.bf16.msra.mxu0 %v448
        %455 = vmatprep.subr.bf16.mxu0 0
        %456 = vmatpush1.bf16.msra.mxu0 0
        %457 = vmatprep.subr.bf16.mxu0 0
        %458 = vmatpush1.bf16.msra.mxu0 0
        %459 = vmatprep.subr.bf16.mxu0 0
        %460 = vmatpush1.bf16.msra.mxu0 0
        %461 = vmatprep.subr.bf16.mxu0 0
        %462 = vmatpush1.bf16.msra.mxu0 0
        %463 = vmatprep.subr.bf16.mxu0 0
        %464 = vmatpush1.bf16.msra.mxu0 0
        %465 = vmatprep.subr.bf16.mxu0 0
        %466 = vmatpush1.bf16.msra.mxu0 0
        %467 = vmatprep.subr.bf16.mxu0 0
        %468 = vmatpush1.bf16.msra.mxu0 0
        %469 = vmatprep.subr.bf16.mxu0 0
        %470 = vmatpush1.bf16.msra.mxu0 0
        %471 = vmatprep.subr.bf16.mxu0 0
        %472 = vmatpush1.bf16.msra.mxu0 0
        %473 = vmatprep.subr.bf16.mxu0 0
        %474 = vmatpush1.bf16.msra.mxu0 0
        %475 = vmatprep.subr.bf16.mxu0 0
        %476 = vmatpush1.bf16.msra.mxu0 0
        %477 = vmatprep.subr.bf16.mxu0 0
        %478 = vmatpush1.bf16.msra.mxu0 0
        %479 = vmatprep.subr.bf16.mxu0 0
        %480 = vmatpush1.bf16.msra.mxu0 0
        %481 = vmatprep.subr.bf16.mxu0 0
        %482 = vmatpush1.bf16.msra.mxu0 0
        %483 = vmatprep.subr.bf16.mxu0 0
        %484 = vmatpush1.bf16.msra.mxu0 0
        %485 = vmatprep.mubr.bf16.mxu0 0
        %486 = vmatmul.mubr.bf16.gmra.mrb[0].mxu0 %v441
        %v487 = vpop.f32.mrb[0].mxu0
        %v488 = vadd.f32 %v412, %v487
        %v489 = vpop.f32.mrb[0].mxu0
        %v490 = vadd.f32 %v412, %v489
        %v491 = vpop.f32.mrb[0].mxu0
        %v492 = vadd.f32 %v417, %v491
        %v493 = vpop.f32.mrb[0].mxu0
        %v494 = vadd.f32 %v417, %v493
        %495 = vmatprep.mubr.bf16.mxu0 0
        %496 = vmatmul.mubr.bf16.gmra.mrb[0].mxu0 %v444
        %v497 = vpop.f32.mrb[0].mxu0
        %v498 = vadd.f32 %v422, %v497
        %v499 = vpop.f32.mrb[0].mxu0
        %v500 = vadd.f32 %v422, %v499
        %v501 = vpop.f32.mrb[0].mxu0
        %v502 = vadd.f32 %v427, %v501
        %v503 = vpop.f32.mrb[0].mxu0
        %v504 = vadd.f32 %v427, %v503
        %505 = vdwg.mxu0
        %v506 = vmax.f32 %v488, 0.0
        %v507 = vmax.f32 %v490, 0.0
        %v508 = vmax.f32 %v492, 0.0
        %v509 = vmax.f32 %v494, 0.0
        %v510 = vmax.f32 %v498, 0.0
        %v511 = vmax.f32 %v500, 0.0
        %v512 = vmax.f32 %v502, 0.0
        %v513 = vmax.f32 %v504, 0.0
        %v514 = vld [vmem:[%s5] sm:$0x3]
        %v515 = vpack.c.bf16 %v508, %v506
        %v516 = vpack.c.bf16 %v509, %v507
        %v517 = vpack.c.bf16 %v512, %v510
        %v518 = vpack.c.bf16 %v513, %v511
        %v519 = vld [vmem:[%s6] sm:$0xf]
        %521 = vset.pattern.permute.xlu0 0
        %522 = vperm.xlu0 %521, %v519
        %v523 = vpop.permute.xlu0 %522
        %vm525 = vcmask 261120
        %v527 = vsel %vm525, %v514, 0
        %529 = vmatprep.subr.bf16.mxu0 %v516
        %530 = vmatpush1.bf16.msra.mxu0 %v515
        %531 = vmatprep.subr.bf16.mxu0 %v518
        %532 = vmatpush1.bf16.msra.mxu0 %v517
        %533 = vmatprep.subr.bf16.mxu0 0
        %534 = vmatpush1.bf16.msra.mxu0 0
        %535 = vmatprep.subr.bf16.mxu0 0
        %536 = vmatpush1.bf16.msra.mxu0 0
        %537 = vmatprep.subr.bf16.mxu0 0
        %538 = vmatpush1.bf16.msra.mxu0 0
        %539 = vmatprep.subr.bf16.mxu0 0
        %540 = vmatpush1.bf16.msra.mxu0 0
        %541 = vmatprep.subr.bf16.mxu0 0
        %542 = vmatpush1.bf16.msra.mxu0 0
        %543 = vmatprep.subr.bf16.mxu0 0
        %544 = vmatpush1.bf16.msra.mxu0 0
        %545 = vmatprep.subr.bf16.mxu0 0
        %546 = vmatpush1.bf16.msra.mxu0 0
        %547 = vmatprep.subr.bf16.mxu0 0
        %548 = vmatpush1.bf16.msra.mxu0 0
        %549 = vmatprep.subr.bf16.mxu0 0
        %550 = vmatpush1.bf16.msra.mxu0 0
        %551 = vmatprep.subr.bf16.mxu0 0
        %552 = vmatpush1.bf16.msra.mxu0 0
        %553 = vmatprep.subr.bf16.mxu0 0
        %554 = vmatpush1.bf16.msra.mxu0 0
        %555 = vmatprep.subr.bf16.mxu0 0
        %556 = vmatpush1.bf16.msra.mxu0 0
        %557 = vmatprep.subr.bf16.mxu0 0
        %558 = vmatpush1.bf16.msra.mxu0 0
        %559 = vmatprep.subr.bf16.mxu0 0
        %560 = vmatpush1.bf16.msra.mxu0 0
        %561 = vmatprep.mubr.bf16.mxu0 0
        %562 = vmatmul.mubr.bf16.gmra.mrb[0].mxu0 %v527
        %v563 = vpop.f32.mrb[0].mxu0
        %v564 = vadd.f32 %v523, %v563
        %v565 = vpop.f32.mrb[0].mxu0
        %v566 = vadd.f32 %v523, %v565
        %v567 = vpop.f32.mrb[0].mxu0
        %v568 = vpop.f32.mrb[0].mxu0
        %569 = vdwg.mxu0
        %v571 = vcombine.high %v381, %v381
        %v573 = vsub.f32 %v564, %v381
        %v574 = vsub.f32 %v566, %v571
        %v575 = vand.u32 2147483647, %v573
        %v576 = vand.u32 2147483647, %v574
        %vm577 = vcmask 1043456
        %v578 = vsel %vm577, %v575, 0.0
        %v579 = vsel %vm577, %v576, 0.0
        %v580 = vadd.f32 %v578, %v579
        %581 = vadd.xlane.f32.xlu0 %v580
        %v582 = vpop.xlane.xlu0 %581
        %v583 = vrot.slane %v582, 4
        %v584 = vadd.f32 %v582, %v583
        %v585 = vrot.slane %v584, 2
        %v586 = vadd.f32 %v584, %v585
        %v587 = vrot.slane %v586, 1
        %v588 = vadd.f32 %v586, %v587
        %s589 = vtos %v588
        %v590 = vstv %s589
        %v591 = vadd.f32 %v590, 0.0
        %592 = vst [vmem:[%s351] sm:$0xff] %v591
        %s593 = sand.u32 %s210, 1
        %s594 = scalar_lea.sflag [#allocation3], %s593
        %s595 = sand.u32 %s210, 1
        %s596 = smul.addr %s595, 8
        %s597 = scalar_lea.vmem [#allocation5], %s596
        // Predicated region
        $region53: #{tpu_custom_call.1} parent=47 // pred_check
          %p598 = pneg %p220
        $region54: #{tpu_custom_call.1} parent=47 // pred_check_branch
          %600 = sbr.rel (%p598) target = $region56
        $region55: #{tpu_custom_call.1} parent=47 // pred_region
          %s602 = ssub.s32 128, 128
          %603 = vsyncadd %s594, %s602
          %s604 = sadd.s32 %s27, %s26
          %s605 = smul.addr %s604, 128
          %s606 = scalar_lea.hbm %s7, %s605
          %s608 = sshll.u32 %s597, 4
          %s609 = int_to_ptr.vmem [resolvable:$true] %s608
          %611 = dma.vmem_to_hbm [thread:$0]  %s609, 128, %s606, %s594
        $region56: #{tpu_custom_call.1} parent=47 // pred_fallthru
          _
      $region48: #{tpu_custom_call.1} parent=5 // pred_fallthru
        _
      %p612 = scmp.le.s32.totalorder 2, %s17
      // Predicated region
      $region57: #{tpu_custom_call.1} parent=5 // pred_check
        %p613 = pneg %p612
      $region58: #{tpu_custom_call.1} parent=5 // pred_check_branch
        %615 = sbr.rel (%p613) target = $region60
      $region59: #{tpu_custom_call.1} parent=5 // pred_region
        %s616 = ssub.s32 %s17, 2
        // Predicated region
        $region61: #{tpu_custom_call.1} parent=59 // pred_check
          %p617 = pneg %p226
        $region62: #{tpu_custom_call.1} parent=59 // pred_check_branch
          %619 = sbr.rel (%p617) target = $region64
        $region63: #{tpu_custom_call.1} parent=59 // pred_region
          %s620 = sand.u32 %s211, 1
          %s621 = scalar_lea.sflag [#allocation3], %s620
          %s622 = sand.u32 %s211, 1
          %s623 = smul.addr %s622, 8
          %s624 = scalar_lea.vmem [#allocation5], %s623
          %625 = dma.done %s621, 128
        $region64: #{tpu_custom_call.1} parent=59 // pred_fallthru
          _
      $region60: #{tpu_custom_call.1} parent=5 // pred_fallthru
        _
    $region6: #{tpu_custom_call.1} parent=1 // loop_footer
      %s21 = sadd.s32 1, %s17
    $region7: #{tpu_custom_call.1} parent=1 // loop_footer_branch
      %16 = sbr.rel target = $region3
    $region8: #{tpu_custom_call.1} parent=1 // loop_exit
      _
    %626 = vsyncpa [#allocation3], 1
    %s627 = scalar_lea.sflag [#allocation3], 1
    %628 = vsyncpa %s627, 1
    %629 = vsyncpa [#allocation4], 1
    %s630 = scalar_lea.sflag [#allocation4], 1
    %631 = vsyncpa %s630, 1

</llo_original>
